<compile_context>
chip_gen: v7x
topology: tpu7x:2x2x1
jax: 0.10.0
libtpu: 0.0.40
codegen_flags: <defaults>
</compile_context>

<pallas_src>
from functools import partial

import numpy as np
import jax
import jax.numpy as jnp
from jax.experimental import pallas as pl
from jax.experimental.pallas import tpu as pltpu


# ----------------------------------------------------------------------------
# Pallas kernels
# ----------------------------------------------------------------------------
def _gemm_act_kernel(x_ref, w_ref, scale_ref, shift_ref, slope_ref, o_ref, *, act):
    """o = act( (x @ w) * scale + shift ); act is a per-column PReLU."""
    acc = jnp.dot(x_ref[...].astype(jnp.bfloat16), w_ref[...],
                  preferred_element_type=jnp.float32)
    y = acc * scale_ref[...] + shift_ref[...]
    if act == "prelu":
        # slope==1 -> identity, slope==0 -> ReLU, slope==0.01 -> LeakyReLU,
        # per-channel slope -> PReLU.
        y = jnp.where(y >= 0.0, y, y * slope_ref[...])
    o_ref[...] = y


def _affine_act_kernel(x_ref, scale_ref, shift_ref, slope_ref, o_ref):
    """Standalone per-channel scale/shift (+PReLU) -- the leading BN of each
    bottleneck (it cannot be folded into the following padded conv)."""
    y = x_ref[...] * scale_ref[...] + shift_ref[...]
    o_ref[...] = jnp.where(y >= 0.0, y, y * slope_ref[...])


def _se_add_kernel(x_ref, sc_ref, w1_ref, w2_ref, o_ref):
    """Fused SEModule + residual add for one sample:
       gate = sigmoid(relu(mean_hw(x) @ w1) @ w2);  o = x * gate + shortcut."""
    x = x_ref[0]                                            # (HW, C) f32
    pooled = jnp.mean(x, axis=0, keepdims=True)             # (1, C)
    h = jnp.dot(pooled.astype(jnp.bfloat16), w1_ref[...],
                preferred_element_type=jnp.float32)
    h = jnp.maximum(h, 0.0)
    g = jnp.dot(h.astype(jnp.bfloat16), w2_ref[...],
                preferred_element_type=jnp.float32)
    g = jax.nn.sigmoid(g)                                   # (1, C)
    o_ref[0] = x * g + sc_ref[0]


def _upsample_add_kernel(k_ref, x_ref, y_ref, o_ref):
    """Bilinear (align_corners=True) upsample as one small Kronecker-operator
    matmul, fused with the lateral add:  o = K @ x + y."""
    u = jnp.dot(k_ref[...], x_ref[0], preferred_element_type=jnp.float32)
    o_ref[0] = u + y_ref[0]


# ----------------------------------------------------------------------------
# Kernel wrappers (jitted per unique shape signature so the ~220 op calls of
# the forward reuse a few dozen compiled kernels).
# ----------------------------------------------------------------------------
def _gemm(x, w, scale, shift, slope, act):
    M, K = x.shape
    K2, N = w.shape
    assert K2 == K
    # Collapse the grid whenever things fit VMEM (single-TC v5e/v6e: every
    # extra grid step is pure overhead). Tile M / the output lanes only when
    # the blocks would get large.
    bm = M if M <= 512 else 512
    assert M % bm == 0
    if K * N * 2 > 8 * 1024 * 1024 and N % 256 == 0:
        bn = 256
    else:
        bn = N
    grid = (M // bm, N // bn)

    return pl.pallas_call(
        partial(_gemm_act_kernel, act=act),
        out_shape=jax.ShapeDtypeStruct((M, N), jnp.float32),
        grid_spec=pltpu.PrefetchScalarGridSpec(
            num_scalar_prefetch=0,
            grid=grid,
            in_specs=[
                pl.BlockSpec((bm, K), lambda i, j: (i, 0)),
                pl.BlockSpec((K, bn), lambda i, j: (0, j)),
                pl.BlockSpec((1, bn), lambda i, j: (0, j)),
                pl.BlockSpec((1, bn), lambda i, j: (0, j)),
                pl.BlockSpec((1, bn), lambda i, j: (0, j)),
            ],
            out_specs=pl.BlockSpec((bm, bn), lambda i, j: (i, j)),
        ),
        compiler_params=pltpu.CompilerParams(
            dimension_semantics=("parallel", "parallel"),
            vmem_limit_bytes=32 * 1024 * 1024,
        ),
    )(x, w, scale, shift, slope)


@partial(jax.jit, static_argnames=("act",))
def gemm_act(x, w, scale, shift, slope, act="prelu"):
    return _gemm(x, w, scale, shift, slope, act)


def _im2col3x3(x, stride):
    """3x3 / pad 1 patches, NHWC in, (N*Ho*Wo, 9*C) out. K index = (kh*3+kw)*C+cin."""
    N, H, W, C = x.shape
    Ho = (H - 1) // stride + 1
    Wo = (W - 1) // stride + 1
    xp = jnp.pad(x, ((0, 0), (1, 1), (1, 1), (0, 0)))
    taps = []
    for dh in range(3):
        for dw in range(3):
            taps.append(xp[:, dh:dh + (Ho - 1) * stride + 1:stride,
                           dw:dw + (Wo - 1) * stride + 1:stride, :])
    patches = jnp.concatenate(taps, axis=-1)               # (N, Ho, Wo, 9C)
    return patches.reshape(N * Ho * Wo, 9 * C), Ho, Wo


@partial(jax.jit, static_argnames=("stride",))
def conv3x3_act(x, w, scale, shift, slope, *, stride):
    """Conv2d(3x3, pad 1) + fused (BN-affine | bias) + (PReLU | LeakyReLU | id)."""
    N = x.shape[0]
    patches, Ho, Wo = _im2col3x3(x, stride)
    y = _gemm(patches, w, scale, shift, slope, act="prelu")
    return y.reshape(N, Ho, Wo, w.shape[1])


@jax.jit
def conv1x1_act(x, w, scale, shift, slope):
    N, H, W, C = x.shape
    y = _gemm(x.reshape(N * H * W, C), w, scale, shift, slope, act="prelu")
    return y.reshape(N, H, W, w.shape[1])


@jax.jit
def affine_act(x, scale, shift, slope):
    N, H, W, C = x.shape
    R = N * H * W
    out = pl.pallas_call(
        _affine_act_kernel,
        out_shape=jax.ShapeDtypeStruct((R, C), jnp.float32),
        grid_spec=pltpu.PrefetchScalarGridSpec(
            num_scalar_prefetch=0,
            grid=(1,),
            in_specs=[
                pl.BlockSpec((R, C), lambda i: (0, 0)),
                pl.BlockSpec((1, C), lambda i: (0, 0)),
                pl.BlockSpec((1, C), lambda i: (0, 0)),
                pl.BlockSpec((1, C), lambda i: (0, 0)),
            ],
            out_specs=pl.BlockSpec((R, C), lambda i: (0, 0)),
        ),
        compiler_params=pltpu.CompilerParams(dimension_semantics=("arbitrary",)),
    )(x.reshape(R, C), scale, shift, slope)
    return out.reshape(N, H, W, C)


@jax.jit
def se_scale_add(x, shortcut, w1, w2):
    N, H, W, C = x.shape
    HW = H * W
    Cr = w1.shape[1]
    out = pl.pallas_call(
        _se_add_kernel,
        out_shape=jax.ShapeDtypeStruct((N, HW, C), jnp.float32),
        grid_spec=pltpu.PrefetchScalarGridSpec(
            num_scalar_prefetch=0,
            grid=(N,),
            in_specs=[
                pl.BlockSpec((1, HW, C), lambda n: (n, 0, 0)),
                pl.BlockSpec((1, HW, C), lambda n: (n, 0, 0)),
                pl.BlockSpec((C, Cr), lambda n: (0, 0)),
                pl.BlockSpec((Cr, C), lambda n: (0, 0)),
            ],
            out_specs=pl.BlockSpec((1, HW, C), lambda n: (n, 0, 0)),
        ),
        compiler_params=pltpu.CompilerParams(dimension_semantics=("parallel",)),
    )(x.reshape(N, HW, C), shortcut.reshape(N, HW, C), w1, w2)
    return out.reshape(N, H, W, C)


def _interp_matrix(out_size, in_size):
    """Rows of the 1-D bilinear interpolation operator, align_corners=True."""
    if in_size == 1:
        return jnp.ones((out_size, 1), jnp.float32)
    pos = jnp.arange(out_size, dtype=jnp.float32) * (in_size - 1) / (out_size - 1)
    lo = jnp.clip(jnp.floor(pos).astype(jnp.int32), 0, in_size - 2)
    frac = pos - lo.astype(jnp.float32)
    eye = jnp.eye(in_size, dtype=jnp.float32)
    return eye[lo] * (1.0 - frac)[:, None] + eye[lo + 1] * frac[:, None]


@jax.jit
def upsample_add(x, y):
    """F.interpolate(x, size=y.spatial, mode='bilinear', align_corners=True) + y."""
    N, Hi, Wi, C = x.shape
    _, Ho, Wo, _ = y.shape
    ry = _interp_matrix(Ho, Hi)
    rx = _interp_matrix(Wo, Wi)
    kron = jnp.einsum("oh,pw->ophw", ry, rx).reshape(Ho * Wo, Hi * Wi)
    out = pl.pallas_call(
        _upsample_add_kernel,
        out_shape=jax.ShapeDtypeStruct((N, Ho * Wo, C), jnp.float32),
        grid_spec=pltpu.PrefetchScalarGridSpec(
            num_scalar_prefetch=0,
            grid=(N,),
            in_specs=[
                pl.BlockSpec((Ho * Wo, Hi * Wi), lambda n: (0, 0)),
                pl.BlockSpec((1, Hi * Wi, C), lambda n: (n, 0, 0)),
                pl.BlockSpec((1, Ho * Wo, C), lambda n: (n, 0, 0)),
            ],
            out_specs=pl.BlockSpec((1, Ho * Wo, C), lambda n: (n, 0, 0)),
        ),
        compiler_params=pltpu.CompilerParams(dimension_semantics=("parallel",)),
    )(kron, x.reshape(N, Hi * Wi, C), y.reshape(N, Ho * Wo, C))
    return out.reshape(N, Ho, Wo, C)


# ----------------------------------------------------------------------------
# Parameter construction (random init, inference-mode BN folded to scale/shift)
# ----------------------------------------------------------------------------
def _ones(c):
    return jnp.ones((1, c), jnp.float32)


def _zeros(c):
    return jnp.zeros((1, c), jnp.float32)


def _init_conv(key, cin, cout, k=3, bias=False):
    kw, kb = jax.random.split(key)
    fan_in = cin * k * k
    w = (jax.random.normal(kw, (k * k * cin, cout), jnp.float32)
         * np.sqrt(2.0 / fan_in)).astype(jnp.bfloat16)
    b = (0.02 * jax.random.normal(kb, (cout,), jnp.float32)) if bias else None
    return w, b


def _init_bn(key, c):
    kg, kb, km, kv = jax.random.split(key, 4)
    gamma = 0.5 + 0.1 * jax.random.normal(kg, (c,), jnp.float32)
    beta = 0.1 * jax.random.normal(kb, (c,), jnp.float32)
    mean = 0.1 * jax.random.normal(km, (c,), jnp.float32)
    var = jax.random.uniform(kv, (c,), jnp.float32, minval=0.5, maxval=1.5)
    scale = gamma * jax.lax.rsqrt(var + 1e-5)
    shift = beta - mean * scale
    return scale.reshape(1, c), shift.reshape(1, c)


def _init_bottleneck(key, in_c, depth, stride):
    ks = jax.random.split(key, 8)
    p = {"stride": stride}
    if in_c != depth:                    # Conv1x1(stride) + BN shortcut
        w, _ = _init_conv(ks[0], in_c, depth, k=1, bias=False)
        s, sh = _init_bn(ks[1], depth)
        p["shortcut"] = (w, s, sh, _ones(depth))
    s1, sh1 = _init_bn(ks[2], in_c)                       # leading BN
    p["bn1"] = (s1, sh1, _ones(in_c))
    w1, _ = _init_conv(ks[3], in_c, depth, 3, bias=False)  # conv1 + PReLU
    p["conv1"] = (w1, _ones(depth), _zeros(depth), 0.25 * _ones(depth))
    w2, _ = _init_conv(ks[4], depth, depth, 3, bias=False)  # conv2 + BN
    s2, sh2 = _init_bn(ks[5], depth)
    p["conv2"] = (w2, s2, sh2, _ones(depth))
    r = depth // 16                                        # SEModule
    p["se_w1"] = (jax.random.normal(ks[6], (depth, r), jnp.float32)
                  * np.sqrt(2.0 / depth)).astype(jnp.bfloat16)
    p["se_w2"] = (jax.random.normal(ks[7], (r, depth), jnp.float32)
                  * np.sqrt(2.0 / r)).astype(jnp.bfloat16)
    return p


def _init_style_block(key, in_c, out_c, spatial):
    num_pools = int(np.log2(spatial))
    ks = jax.random.split(key, num_pools + 2)
    leaky = 0.01 * _ones(out_c)                 # nn.LeakyReLU default slope
    convs = []
    cin = in_c
    for i in range(num_pools):
        w, b = _init_conv(ks[i], cin, out_c, 3, bias=True)
        convs.append((w, _ones(out_c), b.reshape(1, out_c), leaky))
        cin = out_c
    lw = (jax.random.normal(ks[num_pools], (out_c, out_c), jnp.float32)
          * np.sqrt(1.0 / out_c)).astype(jnp.bfloat16)
    lb = 0.02 * jax.random.normal(ks[num_pools + 1], (out_c,), jnp.float32)
    return {"convs": convs, "lin": (lw, _ones(out_c), lb.reshape(1, out_c), leaky)}


def _body_config():
    cfg = []
    for in_c, depth, num_units in ((64, 64, 3), (64, 128, 4),
                                   (128, 256, 14), (256, 512, 3)):
        cfg.append((in_c, depth, 2))
        cfg += [(depth, depth, 1)] * (num_units - 1)
    return cfg                                            # 24 bottlenecks (ResNet-50 IR-SE)


def init_gradual_style_encoder(key):
    keys = iter(jax.random.split(key, 512))
    params = {}
    w, _ = _init_conv(next(keys), 3, 64, 3, bias=False)    # input layer
    bsc, bsh = _init_bn(next(keys), 64)
    params["input"] = (w, bsc, bsh, 0.25 * _ones(64))
    params["body"] = [_init_bottleneck(next(keys), ic, d, s)
                      for ic, d, s in _body_config()]
    styles = []
    for i in range(16):
        spatial = 16 if i < 3 else (32 if i < 7 else 64)
        styles.append(_init_style_block(next(keys), 512, 512, spatial))
    params["styles"] = styles
    w, b = _init_conv(next(keys), 256, 512, 1, bias=True)
    params["lat1"] = (w, _ones(512), b.reshape(1, 512), _ones(512))
    w, b = _init_conv(next(keys), 128, 512, 1, bias=True)
    params["lat2"] = (w, _ones(512), b.reshape(1, 512), _ones(512))
    return params


# ----------------------------------------------------------------------------
# Forward pass (mirrors GradualStyleEncoder.forward)
# ----------------------------------------------------------------------------
def bottleneck_forward(p, x):
    s = p["stride"]
    xs = x if s == 1 else x[:, ::s, ::s, :]                # MaxPool2d(1, stride)
    if "shortcut" in p:
        shortcut = conv1x1_act(xs, *p["shortcut"])
    else:
        shortcut = xs
    t = affine_act(x, *p["bn1"])                           # leading BN
    t = conv3x3_act(t, *p["conv1"], stride=1)              # conv + PReLU
    t = conv3x3_act(t, *p["conv2"], stride=s)              # conv + BN
    return se_scale_add(t, shortcut, p["se_w1"], p["se_w2"])


def style_forward(p, x):
    for w, sc, sh, sl in p["convs"]:
        x = conv3x3_act(x, w, sc, sh, sl, stride=2)        # conv+bias+LeakyReLU
    N, H, W, C = x.shape
    assert H == 1 and W == 1                               # spatial collapsed -> view(-1, out_c)
    return gemm_act(x.reshape(N, C), *p["lin"])            # linear+bias+LeakyReLU


def gradual_style_encoder_forward(params, x_nchw):
    x = jnp.transpose(x_nchw, (0, 2, 3, 1))                # NHWC: channels on lanes
    x = conv3x3_act(x, *params["input"], stride=1)
    c1 = c2 = c3 = None
    for i, bp in enumerate(params["body"]):
        x = bottleneck_forward(bp, x)
        if i == 6:
            c1 = x
        elif i == 20:
            c2 = x
        elif i == 23:
            c3 = x
    latents = [style_forward(params["styles"][j], c3) for j in range(3)]
    p2 = upsample_add(c3, conv1x1_act(c2, *params["lat1"]))
    latents += [style_forward(params["styles"][j], p2) for j in range(3, 7)]
    p1 = upsample_add(p2, conv1x1_act(c1, *params["lat2"]))
    latents += [style_forward(params["styles"][j], p1) for j in range(7, 16)]
    return jnp.stack(latents, axis=1)                      # (N, 16, 512)


# ----------------------------------------------------------------------------
if __name__ == "__main__":
    root = jax.random.PRNGKey(0)
    k_par, k_in, k_chk = jax.random.split(root, 3)

    # Quick numeric sanity check of the fused GEMM kernel vs an f32 reference
    # (bf16 matmul inputs -> loose tolerance).
    kx, kw = jax.random.split(k_chk)
    xt = jax.random.normal(kx, (64, 96), jnp.float32)
    wt = (0.1 * jax.random.normal(kw, (96, 128), jnp.float32)).astype(jnp.bfloat16)
    sc = jnp.ones((1, 128), jnp.float32)
    sh = jnp.zeros((1, 128), jnp.float32)
    sl = 0.01 * jnp.ones((1, 128), jnp.float32)
    got = np.asarray(gemm_act(xt, wt, sc, sh, sl))
    ref = np.asarray(xt) @ np.asarray(wt.astype(jnp.float32))
    ref = np.where(ref >= 0, ref, 0.01 * ref)
    np.testing.assert_allclose(got, ref, rtol=2e-2, atol=2e-2)

    # Small deterministic input consistent with the module (3-channel NCHW).
    N, H, W = 2, 32, 32
    x = jax.random.normal(k_in, (N, 3, H, W), jnp.float32)

    params = init_gradual_style_encoder(k_par)
    out = gradual_style_encoder_forward(params, x)
    out = jax.block_until_ready(out)

    assert out.shape == (N, 16, 512), out.shape
    assert bool(jnp.all(jnp.isfinite(out)))
    print("KERNEL_OK")
</pallas_src>

<mosaic_0001>
module attributes {stable_mosaic.version = 11 : i64} {
  func.func @_gemm_act_kernel(%arg0: i32, %arg1: i32, %arg2: memref<64x96xf32, #tpu.memory_space<vmem>>, %arg3: memref<96x128xbf16, #tpu.memory_space<vmem>>, %arg4: memref<1x128xf32, #tpu.memory_space<vmem>>, %arg5: memref<1x128xf32, #tpu.memory_space<vmem>>, %arg6: memref<1x128xf32, #tpu.memory_space<vmem>>, %arg7: memref<64x128xf32, #tpu.memory_space<vmem>>) attributes {dimension_semantics = [#tpu.dimension_semantics<parallel>, #tpu.dimension_semantics<parallel>], iteration_bounds = array<i64: 1, 1>, scalar_prefetch = 0 : i64, scratch_operands = 0 : i64, tpu.core_type = #tpu.core_type<tc>, window_params = [{transform_indices = @transform_0, window_bounds = array<i64: 64, 96>}, {transform_indices = @transform_1, window_bounds = array<i64: 96, 128>}, {transform_indices = @transform_2, window_bounds = array<i64: 1, 128>}, {transform_indices = @transform_3, window_bounds = array<i64: 1, 128>}, {transform_indices = @transform_4, window_bounds = array<i64: 1, 128>}, {transform_indices = @transform_5, window_bounds = array<i64: 64, 128>}]} {
    %c0 = arith.constant 0 : index
    %c0_0 = arith.constant 0 : index
    %0 = vector.load %arg2[%c0, %c0_0] : memref<64x96xf32, #tpu.memory_space<vmem>>, vector<64x96xf32>
    %1 = arith.truncf %0 : vector<64x96xf32> to vector<64x96xbf16>
    %c0_1 = arith.constant 0 : index
    %c0_2 = arith.constant 0 : index
    %2 = vector.load %arg3[%c0_1, %c0_2] : memref<96x128xbf16, #tpu.memory_space<vmem>>, vector<96x128xbf16>
    %cst = arith.constant dense<0.000000e+00> : vector<64x128xf32>
    %3 = tpu.matmul %1, %2, %cst {dimension_numbers = #tpu.dot_dimension_numbers<[1], [0], [0], [1], [0, 0, 1, 1], [], []>} : vector<64x96xbf16>, vector<96x128xbf16>, vector<64x128xf32> -> vector<64x128xf32>
    %c0_3 = arith.constant 0 : index
    %c0_4 = arith.constant 0 : index
    %4 = vector.load %arg4[%c0_3, %c0_4] : memref<1x128xf32, #tpu.memory_space<vmem>>, vector<1x128xf32>
    %5 = vector.broadcast %4 : vector<1x128xf32> to vector<64x128xf32>
    %6 = arith.mulf %3, %5 : vector<64x128xf32>
    %c0_5 = arith.constant 0 : index
    %c0_6 = arith.constant 0 : index
    %7 = vector.load %arg5[%c0_5, %c0_6] : memref<1x128xf32, #tpu.memory_space<vmem>>, vector<1x128xf32>
    %8 = vector.broadcast %7 : vector<1x128xf32> to vector<64x128xf32>
    %9 = arith.addf %6, %8 : vector<64x128xf32>
    %cst_7 = arith.constant 0.000000e+00 : f32
    %10 = vector.broadcast %cst_7 : f32 to vector<64x128xf32>
    %11 = arith.cmpf oge, %9, %10 : vector<64x128xf32>
    %c0_8 = arith.constant 0 : index
    %c0_9 = arith.constant 0 : index
    %12 = vector.load %arg6[%c0_8, %c0_9] : memref<1x128xf32, #tpu.memory_space<vmem>>, vector<1x128xf32>
    %13 = vector.broadcast %12 : vector<1x128xf32> to vector<64x128xf32>
    %14 = arith.mulf %9, %13 : vector<64x128xf32>
    %15 = arith.select %11, %9, %14 : vector<64x128xi1>, vector<64x128xf32>
    %c0_10 = arith.constant 0 : index
    %c0_11 = arith.constant 0 : index
    %16 = vector.load %arg7[%c0_10, %c0_11] : memref<64x128xf32, #tpu.memory_space<vmem>>, vector<64x128xf32>
    tpu.vector_store %arg7[%c0_10, %c0_11], %15 {strides = array<i32>} : memref<64x128xf32, #tpu.memory_space<vmem>>, vector<64x128xf32>,
    return
  }
  func.func @transform_0(%arg0: i32, %arg1: i32) -> (i32, i32) {
    %c0_i32 = arith.constant 0 : i32
    %c0_i32_0 = arith.constant 0 : i32
    return %arg0, %c0_i32 : i32, i32
  }
  func.func @transform_1(%arg0: i32, %arg1: i32) -> (i32, i32) {
    %c0_i32 = arith.constant 0 : i32
    %c0_i32_0 = arith.constant 0 : i32
    return %c0_i32, %arg1 : i32, i32
  }
  func.func @transform_2(%arg0: i32, %arg1: i32) -> (i32, i32) {
    %c0_i32 = arith.constant 0 : i32
    %c0_i32_0 = arith.constant 0 : i32
    return %c0_i32, %arg1 : i32, i32
  }
  func.func @transform_3(%arg0: i32, %arg1: i32) -> (i32, i32) {
    %c0_i32 = arith.constant 0 : i32
    %c0_i32_0 = arith.constant 0 : i32
    return %c0_i32, %arg1 : i32, i32
  }
  func.func @transform_4(%arg0: i32, %arg1: i32) -> (i32, i32) {
    %c0_i32 = arith.constant 0 : i32
    %c0_i32_0 = arith.constant 0 : i32
    return %c0_i32, %arg1 : i32, i32
  }
  func.func @transform_5(%arg0: i32, %arg1: i32) -> (i32, i32) {
    %c0_i32 = arith.constant 0 : i32
    return %arg0, %arg1 : i32, i32
  }
}

</mosaic_0001>

<llo_original>
// kernel: gemm_act.1
$region0: #{gemm_act.1}
  #allocation0 [shape = 'u32[]', space=smem, size = 0x4, offset = 0x4, fixed_abs, tag = 'smem constant byte address 0x4 - core index']
  #allocation1 [shape = 'u32[144,128]{1,0:T(1,128)}', space=vmem, size = 0x12000, scoped, tag = 'internal scratch']
  %s0 = inlined_call_operand.hbm [shape: f32[64,96], index: 0, kind: input, shape index: {}]
  %s1 = inlined_call_operand.hbm [shape: bf16[96,128], index: 1, kind: input, shape index: {}]
  %s2 = inlined_call_operand.vmem [shape: f32[1,128], index: 2, kind: input, shape index: {}]
  %s3 = inlined_call_operand.vmem [shape: f32[1,128], index: 3, kind: input, shape index: {}]
  %s4 = inlined_call_operand.vmem [shape: f32[1,128], index: 4, kind: input, shape index: {}]
  %s5 = inlined_call_operand.hbm [shape: f32[64,128], index: 5, kind: output, shape index: {}]
  %s6 = sld [smem:[#allocation0]]
  $region38: #{gemm_act.1} parent=0
    _
  %s8 = ssub.s32 1, %s6
  %s9 = scalar_select 0, %s8, %s6
  $region1: #{gemm_act.1} parent=0
    #allocation2 [shape = 'u8[32768]{0}', space=vmem, size = 0x8000, scoped, tag = 'input window, operand 0, single buffered']
    #allocation3 [shape = 's32[1]{0}', space=sflag, size = 0x4, scoped, tag = 'scoped memory for gemm_act.1']
    #allocation4 [shape = 's32[1]{0}', space=sflag, size = 0x4, scoped, tag = 'scoped memory for gemm_act.1']
    #allocation5 [shape = 'u8[24576]{0}', space=vmem, size = 0x6000, scoped, tag = 'input window, operand 1, single buffered']
    #allocation6 [shape = 's32[1]{0}', space=sflag, size = 0x4, scoped, tag = 'scoped memory for gemm_act.1']
    #allocation7 [shape = 'u8[32768]{0}', space=vmem, size = 0x8000, scoped, tag = 'output window, operand 0, single buffered']
    %10 = vsyncpa [#allocation3], 0
    %11 = vsyncpa [#allocation6], 0
    %12 = vsyncpa [#allocation4], 0
    // Predicated region
    $region2: #{gemm_act.1} parent=1 // pred_check
      _
    $region3: #{gemm_act.1} parent=1 // pred_check_branch
      %14 = sbr.rel (0) target = $region5
    $region4: #{gemm_act.1} parent=1 // pred_region
      %s16 = ssub.s32 1024, 1024
      %17 = vsyncadd [#allocation3], %s16
      %s18 = sshll.u32 [#allocation2], 4
      %s19 = int_to_ptr.vmem [resolvable:$true] %s18
      %24 = dma.hbm_to_vmem [thread:$0]  %s0, 1024, %s19, [#allocation3], 128, 128, 8
    $region5: #{gemm_act.1} parent=1 // pred_fallthru
      _
    // Predicated region
    $region6: #{gemm_act.1} parent=1 // pred_check
      _
    $region7: #{gemm_act.1} parent=1 // pred_check_branch
      %26 = sbr.rel (0) target = $region9
    $region8: #{gemm_act.1} parent=1 // pred_region
      %s28 = ssub.s32 768, 768
      %29 = vsyncadd [#allocation6], %s28
      %s30 = sshll.u32 [#allocation5], 4
      %s31 = int_to_ptr.vmem [resolvable:$true] %s30
      %36 = dma.hbm_to_vmem [thread:$0]  %s1, 768, %s31, [#allocation6], 64, 64, 4
    $region9: #{gemm_act.1} parent=1 // pred_fallthru
      _
    // Predicated region
    $region10: #{gemm_act.1} parent=1 // pred_check
      _
    $region11: #{gemm_act.1} parent=1 // pred_check_branch
      %38 = sbr.rel (0) target = $region13
    $region12: #{gemm_act.1} parent=1 // pred_region
      _
    $region13: #{gemm_act.1} parent=1 // pred_fallthru
      _
    // Predicated region
    $region14: #{gemm_act.1} parent=1 // pred_check
      _
    $region15: #{gemm_act.1} parent=1 // pred_check_branch
      %40 = sbr.rel (0) target = $region17
    $region16: #{gemm_act.1} parent=1 // pred_region
      _
    $region17: #{gemm_act.1} parent=1 // pred_fallthru
      _
    // Predicated region
    $region18: #{gemm_act.1} parent=1 // pred_check
      _
    $region19: #{gemm_act.1} parent=1 // pred_check_branch
      %42 = sbr.rel (0) target = $region21
    $region20: #{gemm_act.1} parent=1 // pred_region
      _
    $region21: #{gemm_act.1} parent=1 // pred_fallthru
      _
    // Predicated region
    $region22: #{gemm_act.1} parent=1 // pred_check
      _
    $region23: #{gemm_act.1} parent=1 // pred_check_branch
      %44 = sbr.rel (0) target = $region25
    $region24: #{gemm_act.1} parent=1 // pred_region
      %45 = dma.done [#allocation3], 1024
    $region25: #{gemm_act.1} parent=1 // pred_fallthru
      _
    // Predicated region
    $region26: #{gemm_act.1} parent=1 // pred_check
      _
    $region27: #{gemm_act.1} parent=1 // pred_check_branch
      %47 = sbr.rel (0) target = $region29
    $region28: #{gemm_act.1} parent=1 // pred_region
      %48 = dma.done [#allocation6], 768
    $region29: #{gemm_act.1} parent=1 // pred_fallthru
      _
    %v50 = vld [vmem:[#allocation2] sm:$0xff]
    %v51 = vld [vmem:[#allocation2 + $0x8] sm:$0xff]
    %v52 = vld [vmem:[#allocation2 + $0x10] sm:$0xff]
    %v53 = vld [vmem:[#allocation2 + $0x18] sm:$0xff]
    %v54 = vld [vmem:[#allocation2 + $0x20] sm:$0xff]
    %v55 = vld [vmem:[#allocation2 + $0x28] sm:$0xff]
    %v56 = vld [vmem:[#allocation2 + $0x30] sm:$0xff]
    %v57 = vld [vmem:[#allocation2 + $0x38] sm:$0xff]
    %v58 = vpack.c.bf16 %v51, %v50
    %v59 = vpack.c.bf16 %v53, %v52
    %v60 = vpack.c.bf16 %v55, %v54
    %v61 = vpack.c.bf16 %v57, %v56
    %v62 = vld [vmem:[#allocation5] sm:$0xf]
    %v63 = vld [vmem:[#allocation5 + $0x4] sm:$0xf]
    %v64 = vld [vmem:[#allocation5 + $0x8] sm:$0xf]
    %v65 = vld [vmem:[#allocation5 + $0xc] sm:$0xf]
    %v66 = vld [vmem:[#allocation5 + $0x10] sm:$0xf]
    %v67 = vld [vmem:[#allocation5 + $0x14] sm:$0xf]
    %v68 = vld [vmem:[#allocation5 + $0x18] sm:$0xf]
    %v69 = vld [vmem:[#allocation5 + $0x1c] sm:$0xf]
    %v70 = vld [vmem:[#allocation5 + $0x20] sm:$0xf]
    %v71 = vld [vmem:[#allocation5 + $0x24] sm:$0xf]
    %v72 = vld [vmem:[#allocation5 + $0x28] sm:$0xf]
    %v73 = vld [vmem:[#allocation5 + $0x2c] sm:$0xf]
    %v86 = vunpack.c.l.b16 %v62
    %v87 = vunpack.c.l.b16 %v63
    %v88 = vunpack.c.l.b16 %v64
    %v89 = vunpack.c.l.b16 %v65
    %v90 = vunpack.c.l.b16 %v66
    %v91 = vunpack.c.l.b16 %v67
    %v92 = vunpack.c.l.b16 %v68
    %v93 = vunpack.c.l.b16 %v69
    %v94 = vunpack.c.l.b16 %v70
    %v95 = vunpack.c.l.b16 %v71
    %v96 = vunpack.c.l.b16 %v72
    %v97 = vunpack.c.l.b16 %v73
    %v98 = vpack.c.b16 %v87, %v86
    %v99 = vpack.c.b16 %v89, %v88
    %v100 = vpack.c.b16 %v91, %v90
    %v101 = vpack.c.b16 %v93, %v92
    %v102 = vpack.c.b16 %v95, %v94
    %v103 = vpack.c.b16 %v97, %v96
    %vm110 = vcmask 785408
    %v112 = vsel %vm110, %v58, 0
    %v115 = vsel %vm110, %v59, 0
    %v118 = vsel %vm110, %v60, 0
    %v121 = vsel %vm110, %v61, 0
    %123 = vmatprep.subr.bf16.mxu0 0
    %124 = vmatpush1.bf16.msra.mxu0 %v98
    %125 = vmatprep.subr.bf16.mxu0 0
    %126 = vmatpush1.bf16.msra.mxu0 %v99
    %127 = vmatprep.subr.bf16.mxu0 0
    %128 = vmatpush1.bf16.msra.mxu0 %v100
    %129 = vmatprep.subr.bf16.mxu0 0
    %130 = vmatpush1.bf16.msra.mxu0 %v101
    %131 = vmatprep.subr.bf16.mxu0 0
    %132 = vmatpush1.bf16.msra.mxu0 %v102
    %133 = vmatprep.subr.bf16.mxu0 0
    %134 = vmatpush1.bf16.msra.mxu0 %v103
    %135 = vmatprep.subr.bf16.mxu0 0
    %136 = vmatpush1.bf16.msra.mxu0 0
    %137 = vmatprep.subr.bf16.mxu0 0
    %138 = vmatpush1.bf16.msra.mxu0 0
    %139 = vmatprep.subr.bf16.mxu0 0
    %140 = vmatpush1.bf16.msra.mxu0 0
    %141 = vmatprep.subr.bf16.mxu0 0
    %142 = vmatpush1.bf16.msra.mxu0 0
    %143 = vmatprep.subr.bf16.mxu0 0
    %144 = vmatpush1.bf16.msra.mxu0 0
    %145 = vmatprep.subr.bf16.mxu0 0
    %146 = vmatpush1.bf16.msra.mxu0 0
    %147 = vmatprep.subr.bf16.mxu0 0
    %148 = vmatpush1.bf16.msra.mxu0 0
    %149 = vmatprep.subr.bf16.mxu0 0
    %150 = vmatpush1.bf16.msra.mxu0 0
    %151 = vmatprep.subr.bf16.mxu0 0
    %152 = vmatpush1.bf16.msra.mxu0 0
    %153 = vmatprep.subr.bf16.mxu0 0
    %154 = vmatpush1.bf16.msra.mxu0 0
    %155 = vmatprep.mubr.bf16.mxu0 0
    %156 = vmatmul.mubr.bf16.gmra.mrb[0].mxu0 %v112
    %v157 = vpop.f32.mrb[0].mxu0
    %v158 = vadd.f32 0.0, %v157
    %v159 = vpop.f32.mrb[0].mxu0
    %v160 = vpop.f32.mrb[0].mxu0
    %v161 = vadd.f32 0.0, %v160
    %v162 = vpop.f32.mrb[0].mxu0
    %163 = vmatprep.mubr.bf16.mxu0 0
    %164 = vmatmul.mubr.bf16.gmra.mrb[0].mxu0 %v115
    %v165 = vpop.f32.mrb[0].mxu0
    %v166 = vadd.f32 0.0, %v165
    %v167 = vpop.f32.mrb[0].mxu0
    %v168 = vpop.f32.mrb[0].mxu0
    %v169 = vadd.f32 0.0, %v168
    %v170 = vpop.f32.mrb[0].mxu0
    %171 = vmatprep.mubr.bf16.mxu0 0
    %172 = vmatmul.mubr.bf16.gmra.mrb[0].mxu0 %v118
    %v173 = vpop.f32.mrb[0].mxu0
    %v174 = vadd.f32 0.0, %v173
    %v175 = vpop.f32.mrb[0].mxu0
    %v176 = vpop.f32.mrb[0].mxu0
    %v177 = vadd.f32 0.0, %v176
    %v178 = vpop.f32.mrb[0].mxu0
    %179 = vmatprep.mubr.bf16.mxu0 0
    %180 = vmatmul.mubr.bf16.gmra.mrb[0].mxu0 %v121
    %v181 = vpop.f32.mrb[0].mxu0
    %v182 = vadd.f32 0.0, %v181
    %v183 = vpop.f32.mrb[0].mxu0
    %v184 = vpop.f32.mrb[0].mxu0
    %v185 = vadd.f32 0.0, %v184
    %v186 = vpop.f32.mrb[0].mxu0
    %187 = vdwg.mxu0
    %v188 = vld [vmem:[%s2] sm:$0x1]
    %v190 = vlaneseq
    %v191 = vshrl.u32 %v190, 7
    %v192 = vsub.s32 0, %v191
    %v193 = vrot.slane %v188, %v192
    %v195 = vmul.f32 %v158, %v193
    %v196 = vmul.f32 %v161, %v193
    %v197 = vmul.f32 %v166, %v193
    %v198 = vmul.f32 %v169, %v193
    %v199 = vmul.f32 %v174, %v193
    %v200 = vmul.f32 %v177, %v193
    %v201 = vmul.f32 %v182, %v193
    %v202 = vmul.f32 %v185, %v193
    %v203 = vld [vmem:[%s3] sm:$0x1]
    %v205 = vlaneseq
    %v206 = vshrl.u32 %v205, 7
    %v207 = vsub.s32 0, %v206
    %v208 = vrot.slane %v203, %v207
    %v210 = vadd.f32 %v195, %v208
    %v211 = vadd.f32 %v196, %v208
    %v212 = vadd.f32 %v197, %v208
    %v213 = vadd.f32 %v198, %v208
    %v214 = vadd.f32 %v199, %v208
    %v215 = vadd.f32 %v200, %v208
    %v216 = vadd.f32 %v201, %v208
    %v217 = vadd.f32 %v202, %v208
    %vm218 = vcmp.ge.f32.partialorder %v210, 0.0
    %vm219 = vcmp.ge.f32.partialorder %v211, 0.0
    %vm220 = vcmp.ge.f32.partialorder %v212, 0.0
    %vm221 = vcmp.ge.f32.partialorder %v213, 0.0
    %vm222 = vcmp.ge.f32.partialorder %v214, 0.0
    %vm223 = vcmp.ge.f32.partialorder %v215, 0.0
    %vm224 = vcmp.ge.f32.partialorder %v216, 0.0
    %vm225 = vcmp.ge.f32.partialorder %v217, 0.0
    %v226 = vld [vmem:[%s4] sm:$0x1]
    %v228 = vlaneseq
    %v229 = vshrl.u32 %v228, 7
    %v230 = vsub.s32 0, %v229
    %v231 = vrot.slane %v226, %v230
    %v233 = vmul.f32 %v210, %v231
    %v234 = vmul.f32 %v211, %v231
    %v235 = vmul.f32 %v212, %v231
    %v236 = vmul.f32 %v213, %v231
    %v237 = vmul.f32 %v214, %v231
    %v238 = vmul.f32 %v215, %v231
    %v239 = vmul.f32 %v216, %v231
    %v240 = vmul.f32 %v217, %v231
    %v241 = vsel %vm218, %v210, %v233
    %v242 = vsel %vm219, %v211, %v234
    %v243 = vsel %vm220, %v212, %v235
    %v244 = vsel %vm221, %v213, %v236
    %v245 = vsel %vm222, %v214, %v237
    %v246 = vsel %vm223, %v215, %v238
    %v247 = vsel %vm224, %v216, %v239
    %v248 = vsel %vm225, %v217, %v240
    %249 = vst [vmem:[#allocation7] sm:$0xff] %v241
    %250 = vst [vmem:[#allocation7 + $0x8] sm:$0xff] %v242
    %251 = vst [vmem:[#allocation7 + $0x10] sm:$0xff] %v243
    %252 = vst [vmem:[#allocation7 + $0x18] sm:$0xff] %v244
    %253 = vst [vmem:[#allocation7 + $0x20] sm:$0xff] %v245
    %254 = vst [vmem:[#allocation7 + $0x28] sm:$0xff] %v246
    %255 = vst [vmem:[#allocation7 + $0x30] sm:$0xff] %v247
    %256 = vst [vmem:[#allocation7 + $0x38] sm:$0xff] %v248
    // Predicated region
    $region30: #{gemm_act.1} parent=1 // pred_check
      _
    $region31: #{gemm_act.1} parent=1 // pred_check_branch
      %258 = sbr.rel (0) target = $region33
    $region32: #{gemm_act.1} parent=1 // pred_region
      %s260 = ssub.s32 1024, 1024
      %261 = vsyncadd [#allocation4], %s260
      %s262 = sshll.u32 [#allocation7], 4
      %s263 = int_to_ptr.vmem [resolvable:$true] %s262
      %268 = dma.vmem_to_hbm [thread:$0]  %s263, 1024, %s5, [#allocation4], 128, 128, 8
    $region33: #{gemm_act.1} parent=1 // pred_fallthru
      _
    // Predicated region
    $region34: #{gemm_act.1} parent=1 // pred_check
      _
    $region35: #{gemm_act.1} parent=1 // pred_check_branch
      %270 = sbr.rel (0) target = $region37
    $region36: #{gemm_act.1} parent=1 // pred_region
      %271 = dma.done [#allocation4], 1024
    $region37: #{gemm_act.1} parent=1 // pred_fallthru
      _
    %272 = vsyncpa [#allocation3], 1
    %273 = vsyncpa [#allocation6], 1
    %274 = vsyncpa [#allocation4], 1

</llo_original>
